<compile_context>
chip_gen: v7x
topology: tpu7x:2x2x1
jax: 0.10.0
libtpu: 0.0.40
codegen_flags: <defaults>
</compile_context>

<pallas_src>
from functools import partial

import jax
import jax.numpy as jnp
from jax import lax
from jax.experimental import pallas as pl
from jax.experimental.pallas import tpu as pltpu


def _sq_diff_sum(a, b):
    d = a.astype(jnp.float32) - b.astype(jnp.float32)
    return jnp.sum(d * d)


def _tv_loss_kernel(x_ref, o_ref, carry_ref, *, H, W, TH, NT):
    c = pl.program_id(1)
    t = pl.program_id(2)

    @pl.when(jnp.logical_and(c == 0, t == 0))
    def _init():
        o_ref[...] = jnp.zeros_like(o_ref)

    def accumulate(h_p, w_p):
        # Place the two scalar partial sums at [0,0] / [1,0] of the resident
        # (8,128) accumulator tile (written back to HBM only once per image).
        row = lax.broadcasted_iota(jnp.int32, (8, 128), 0)
        lane = lax.broadcasted_iota(jnp.int32, (8, 128), 1)
        contrib = (jnp.where(jnp.logical_and(row == 0, lane == 0), h_p, 0.0)
                   + jnp.where(jnp.logical_and(row == 1, lane == 0), w_p, 0.0))
        o_ref[0] = o_ref[0] + contrib

    def full_tile():
        # All TH rows of this tile are in-bounds: no masks needed at all.
        if W > 1:
            w_p = _sq_diff_sum(x_ref[0, :, :, pl.ds(1, W - 1)],
                               x_ref[0, :, :, pl.ds(0, W - 1)])
        else:
            w_p = jnp.float32(0.0)
        if TH > 1:
            h_p = _sq_diff_sum(x_ref[0, :, pl.ds(1, TH - 1), :],
                               x_ref[0, :, pl.ds(0, TH - 1), :])
        else:
            h_p = jnp.float32(0.0)
        if NT > 1:
            # Vertical pair straddling the tile boundary via carried last row.
            first = x_ref[0, :, 0, :].astype(jnp.float32)          # (Ct, W)
            last = x_ref[0, :, TH - 1, :].astype(jnp.float32)      # (Ct, W)
            db = first - carry_ref[...]
            h_p = h_p + jnp.where(t > 0, jnp.sum(db * db), 0.0)    # select: stale carry safe
            carry_ref[...] = last
        accumulate(h_p, w_p)

    rem = H - (NT - 1) * TH   # rows in the last tile (trace-time constant)

    def last_tile():
        # Ragged last tile (rem < TH, NT >= 2, t == NT-1 > 0).  Only the valid
        # rows are sliced (static extents), so padded garbage is never read.
        if W > 1:
            w_p = _sq_diff_sum(x_ref[0, :, pl.ds(0, rem), pl.ds(1, W - 1)],
                               x_ref[0, :, pl.ds(0, rem), pl.ds(0, W - 1)])
        else:
            w_p = jnp.float32(0.0)
        if rem > 1:
            h_p = _sq_diff_sum(x_ref[0, :, pl.ds(1, rem - 1), :],
                               x_ref[0, :, pl.ds(0, rem - 1), :])
        else:
            h_p = jnp.float32(0.0)
        db = x_ref[0, :, 0, :].astype(jnp.float32) - carry_ref[...]
        h_p = h_p + jnp.sum(db * db)
        accumulate(h_p, w_p)

    if rem == TH:            # H divisible by TH (or single tile): one fast path
        full_tile()
    else:
        pl.when(t < NT - 1)(full_tile)
        pl.when(t == NT - 1)(last_tile)


def tv_loss(x, tv_weight=1.0, row_tile=None, ch_tile=None,
            block_budget_bytes=6 * 1024 * 1024):
    """TV_loss.forward: weight * 2 * (h_tv/count_h + w_tv/count_w) / batch."""
    B, C, H, W = x.shape
    itemsize = jnp.dtype(x.dtype).itemsize
    sub = max(8, 32 // itemsize)              # sublane granule: 8 f32, 16 bf16
    lane_w = pl.cdiv(W, 128) * 128            # VMEM lane padding of the block

    def slab_bytes(ct, rows):                 # f32-equivalent working-set size
        return ct * rows * lane_w * 4

    # --- channel tile: only split C if even an 8(/16)-row slab is too big ---
    if ch_tile is None:
        if slab_bytes(C, sub) <= block_budget_bytes:
            Ct = C
        else:
            Ct = 1
            for d in range(C, 0, -1):
                if C % d == 0 and slab_bytes(d, sub) <= block_budget_bytes:
                    Ct = d
                    break
    else:
        Ct = int(ch_tile)
        assert C % Ct == 0, "ch_tile must divide C"
    NC = C // Ct

    # --- row tile: whole image if it fits the budget, else aligned tile ---
    if row_tile is None:
        th_cap = max(sub, (block_budget_bytes // slab_bytes(Ct, 1)) // sub * sub)
        TH = H if H <= th_cap else th_cap
    else:
        TH = min(int(row_tile), H)
    if TH < H:
        assert TH % sub == 0, f"row_tile must be a multiple of {sub} when it tiles H"
    NT = pl.cdiv(H, TH)

    kernel = partial(_tv_loss_kernel, H=H, W=W, TH=TH, NT=NT)

    parts = pl.pallas_call(
        kernel,
        out_shape=jax.ShapeDtypeStruct((B, 8, 128), jnp.float32),
        grid_spec=pltpu.PrefetchScalarGridSpec(
            num_scalar_prefetch=0,
            grid=(B, NC, NT),
            in_specs=[
                pl.BlockSpec((1, Ct, TH, W), lambda b, c, t: (b, c, t, 0)),
            ],
            out_specs=pl.BlockSpec((1, 8, 128), lambda b, c, t: (b, 0, 0)),
            scratch_shapes=[pltpu.VMEM((Ct, W), jnp.float32)],
        ),
        compiler_params=pltpu.CompilerParams(
            dimension_semantics=("parallel", "arbitrary", "arbitrary"),
            vmem_limit_bytes=48 * 1024 * 1024,
        ),
    )(x)

    h_tv = jnp.sum(parts[:, 0, 0])
    w_tv = jnp.sum(parts[:, 1, 0])
    count_h = (H - 1) * W
    count_w = H * (W - 1)
    return tv_weight * 2.0 * (h_tv / count_h + w_tv / count_w) / B


def _reference(x, tv_weight=1.0):
    """Pure-JAX mirror of the PyTorch TV_loss.forward (for validation)."""
    x = x.astype(jnp.float32)
    B, C, H, W = x.shape
    count_h = (H - 1) * W
    count_w = H * (W - 1)
    h_tv = jnp.sum(jnp.square(x[:, :, 1:, :] - x[:, :, :-1, :]))
    w_tv = jnp.sum(jnp.square(x[:, :, :, 1:] - x[:, :, :, :-1]))
    return tv_weight * 2.0 * (h_tv / count_h + w_tv / count_w) / B


if __name__ == "__main__":
    key = jax.random.PRNGKey(0)
    k1, k2, k3, k4 = jax.random.split(key, 4)

    # Case 1: small NCHW input, single block per image (no tiling paths).
    x1 = jax.random.uniform(k1, (2, 4, 16, 16), dtype=jnp.float32)
    out1 = jax.block_until_ready(tv_loss(x1))
    ref1 = _reference(x1)
    assert jnp.allclose(out1, ref1, rtol=1e-5, atol=1e-5), (out1, ref1)

    # Case 2: H-tiled path with carry across row tiles and a ragged last tile
    # (H=20, 8-row tiles -> 3 tiles, remainder 4).
    x2 = jax.random.uniform(k2, (2, 3, 20, 16), dtype=jnp.float32)
    out2 = jax.block_until_ready(tv_loss(x2, row_tile=8))
    ref2 = _reference(x2)
    assert jnp.allclose(out2, ref2, rtol=1e-5, atol=1e-5), (out2, ref2)

    # Case 3: channel-tiled + row-tiled path (grid = (B, NC, NT) accumulation).
    x3 = jax.random.uniform(k3, (2, 4, 20, 16), dtype=jnp.float32)
    out3 = jax.block_until_ready(tv_loss(x3, row_tile=8, ch_tile=2))
    ref3 = _reference(x3)
    assert jnp.allclose(out3, ref3, rtol=1e-5, atol=1e-5), (out3, ref3)

    # Case 4: bf16 input consumed directly (in-kernel upcast, half HBM bytes).
    x4 = jax.random.uniform(k4, (2, 4, 16, 16), dtype=jnp.float32).astype(jnp.bfloat16)
    out4 = jax.block_until_ready(tv_loss(x4))
    ref4 = _reference(x4)
    assert jnp.allclose(out4, ref4, rtol=1e-3, atol=1e-3), (out4, ref4)

    print("KERNEL_OK")
</pallas_src>

<mosaic_0001>
module attributes {stable_mosaic.version = 11 : i64} {
  func.func @_tv_loss_kernel(%arg0: i32, %arg1: i32, %arg2: i32, %arg3: memref<1x4x16x16xf32, #tpu.memory_space<vmem>>, %arg4: memref<1x8x128xf32, #tpu.memory_space<vmem>>, %arg5: memref<4x16xf32, #tpu.memory_space<vmem>>) attributes {dimension_semantics = [#tpu.dimension_semantics<parallel>, #tpu.dimension_semantics<arbitrary>, #tpu.dimension_semantics<arbitrary>], iteration_bounds = array<i64: 2, 1, 1>, scalar_prefetch = 0 : i64, scratch_operands = 1 : i64, tpu.core_type = #tpu.core_type<tc>, window_params = [{transform_indices = @transform_0, window_bounds = array<i64: 1, 4, 16, 16>}, {transform_indices = @transform_1, window_bounds = array<i64: 1, 8, 128>}]} {
    %c0_i32 = arith.constant 0 : i32
    %0 = arith.cmpi eq, %arg1, %c0_i32 : i32
    %c0_i32_0 = arith.constant 0 : i32
    %1 = arith.cmpi eq, %arg2, %c0_i32_0 : i32
    %2 = arith.andi %0, %1 : i1
    %3 = arith.extui %2 : i1 to i32
    %c0_i32_1 = arith.constant 0 : i32
    %4 = arith.cmpi ne, %3, %c0_i32_1 : i32
    scf.if %4 {
      %cst_28 = arith.constant 0.000000e+00 : f32
      %50 = vector.broadcast %cst_28 : f32 to vector<1x8x128xf32>
      %c0_29 = arith.constant 0 : index
      %c0_30 = arith.constant 0 : index
      %c0_31 = arith.constant 0 : index
      %51 = vector.load %arg4[%c0_29, %c0_30, %c0_31] : memref<1x8x128xf32, #tpu.memory_space<vmem>>, vector<1x8x128xf32>
      tpu.vector_store %arg4[%c0_29, %c0_30, %c0_31], %50 {strides = array<i32>} : memref<1x8x128xf32, #tpu.memory_space<vmem>>, vector<1x8x128xf32>,
    } else {
    }
    %c0 = arith.constant 0 : index
    %c0_2 = arith.constant 0 : index
    %c0_3 = arith.constant 0 : index
    %c1 = arith.constant 1 : index
    %5 = vector.load %arg3[%c0, %c0_2, %c0_3, %c1] : memref<1x4x16x16xf32, #tpu.memory_space<vmem>>, vector<1x4x16x15xf32>
    %6 = vector.shape_cast %5 : vector<1x4x16x15xf32> to vector<4x16x15xf32>
    %c0_4 = arith.constant 0 : index
    %c0_5 = arith.constant 0 : index
    %c0_6 = arith.constant 0 : index
    %c0_7 = arith.constant 0 : index
    %7 = vector.load %arg3[%c0_4, %c0_5, %c0_6, %c0_7] : memref<1x4x16x16xf32, #tpu.memory_space<vmem>>, vector<1x4x16x15xf32>
    %8 = vector.shape_cast %7 : vector<1x4x16x15xf32> to vector<4x16x15xf32>
    %9 = arith.subf %6, %8 : vector<4x16x15xf32>
    %10 = arith.mulf %9, %9 : vector<4x16x15xf32>
    %11 = vector.shape_cast %10 : vector<4x16x15xf32> to vector<1x4x16x15xf32>
    %cst = arith.constant dense<0.000000e+00> : vector<1xf32>
    %12 = vector.multi_reduction <add>, %11, %cst [1, 2, 3] : vector<1x4x16x15xf32> to vector<1xf32>
    %13 = vector.shape_cast %12 : vector<1xf32> to vector<1x1x1x1xf32>
    %14 = vector.extract %13[0, 0, 0, 0] : f32 from vector<1x1x1x1xf32>
    %c0_8 = arith.constant 0 : index
    %c0_9 = arith.constant 0 : index
    %c1_10 = arith.constant 1 : index
    %c0_11 = arith.constant 0 : index
    %15 = vector.load %arg3[%c0_8, %c0_9, %c1_10, %c0_11] : memref<1x4x16x16xf32, #tpu.memory_space<vmem>>, vector<1x4x15x16xf32>
    %16 = vector.shape_cast %15 : vector<1x4x15x16xf32> to vector<4x15x16xf32>
    %c0_12 = arith.constant 0 : index
    %c0_13 = arith.constant 0 : index
    %c0_14 = arith.constant 0 : index
    %c0_15 = arith.constant 0 : index
    %17 = vector.load %arg3[%c0_12, %c0_13, %c0_14, %c0_15] : memref<1x4x16x16xf32, #tpu.memory_space<vmem>>, vector<1x4x15x16xf32>
    %18 = vector.shape_cast %17 : vector<1x4x15x16xf32> to vector<4x15x16xf32>
    %19 = arith.subf %16, %18 : vector<4x15x16xf32>
    %20 = arith.mulf %19, %19 : vector<4x15x16xf32>
    %21 = vector.shape_cast %20 : vector<4x15x16xf32> to vector<1x4x15x16xf32>
    %cst_16 = arith.constant dense<0.000000e+00> : vector<1xf32>
    %22 = vector.multi_reduction <add>, %21, %cst_16 [1, 2, 3] : vector<1x4x15x16xf32> to vector<1xf32>
    %23 = vector.shape_cast %22 : vector<1xf32> to vector<1x1x1x1xf32>
    %24 = vector.extract %23[0, 0, 0, 0] : f32 from vector<1x1x1x1xf32>
    %25 = tpu.iota {dimensions = array<i32: 0>} : vector<8x128xi32>
    %26 = tpu.iota {dimensions = array<i32: 1>} : vector<8x128xi32>
    %c0_i32_17 = arith.constant 0 : i32
    %27 = vector.broadcast %c0_i32_17 : i32 to vector<8x128xi32>
    %28 = arith.cmpi eq, %25, %27 : vector<8x128xi32>
    %c0_i32_18 = arith.constant 0 : i32
    %29 = vector.broadcast %c0_i32_18 : i32 to vector<8x128xi32>
    %30 = arith.cmpi eq, %26, %29 : vector<8x128xi32>
    %31 = arith.andi %28, %30 : vector<8x128xi1>
    %cst_19 = arith.constant 0.000000e+00 : f32
    %32 = vector.broadcast %24 : f32 to vector<8x128xf32>
    %33 = vector.broadcast %cst_19 : f32 to vector<8x128xf32>
    %34 = arith.select %31, %32, %33 : vector<8x128xi1>, vector<8x128xf32>
    %c1_i32 = arith.constant 1 : i32
    %35 = vector.broadcast %c1_i32 : i32 to vector<8x128xi32>
    %36 = arith.cmpi eq, %25, %35 : vector<8x128xi32>
    %c0_i32_20 = arith.constant 0 : i32
    %37 = vector.broadcast %c0_i32_20 : i32 to vector<8x128xi32>
    %38 = arith.cmpi eq, %26, %37 : vector<8x128xi32>
    %39 = arith.andi %36, %38 : vector<8x128xi1>
    %cst_21 = arith.constant 0.000000e+00 : f32
    %40 = vector.broadcast %14 : f32 to vector<8x128xf32>
    %41 = vector.broadcast %cst_21 : f32 to vector<8x128xf32>
    %42 = arith.select %39, %40, %41 : vector<8x128xi1>, vector<8x128xf32>
    %43 = arith.addf %34, %42 : vector<8x128xf32>
    %c0_22 = arith.constant 0 : index
    %c0_23 = arith.constant 0 : index
    %c0_24 = arith.constant 0 : index
    %44 = vector.load %arg4[%c0_22, %c0_23, %c0_24] : memref<1x8x128xf32, #tpu.memory_space<vmem>>, vector<1x8x128xf32>
    %45 = vector.shape_cast %44 : vector<1x8x128xf32> to vector<8x128xf32>
    %46 = arith.addf %45, %43 : vector<8x128xf32>
    %c0_25 = arith.constant 0 : index
    %c0_26 = arith.constant 0 : index
    %c0_27 = arith.constant 0 : index
    %47 = vector.load %arg4[%c0_25, %c0_26, %c0_27] : memref<1x8x128xf32, #tpu.memory_space<vmem>>, vector<1x8x128xf32>
    %48 = vector.shape_cast %47 : vector<1x8x128xf32> to vector<8x128xf32>
    %49 = vector.shape_cast %46 : vector<8x128xf32> to vector<1x8x128xf32>
    tpu.vector_store %arg4[%c0_25, %c0_26, %c0_27], %49 {strides = array<i32>} : memref<1x8x128xf32, #tpu.memory_space<vmem>>, vector<1x8x128xf32>,
    return
  }
  func.func @transform_0(%arg0: i32, %arg1: i32, %arg2: i32) -> (i32, i32, i32, i32) {
    %c0_i32 = arith.constant 0 : i32
    %c0_i32_0 = arith.constant 0 : i32
    return %arg0, %arg1, %arg2, %c0_i32 : i32, i32, i32, i32
  }
  func.func @transform_1(%arg0: i32, %arg1: i32, %arg2: i32) -> (i32, i32, i32) {
    %c0_i32 = arith.constant 0 : i32
    %c0_i32_0 = arith.constant 0 : i32
    %c0_i32_1 = arith.constant 0 : i32
    return %arg0, %c0_i32, %c0_i32_0 : i32, i32, i32
  }
}

</mosaic_0001>

<llo_original>
// kernel: tpu_custom_call.1
$region0: #{tpu_custom_call.1}
  #allocation0 [shape = 'u32[]', space=smem, size = 0x4, offset = 0x4, fixed_abs, tag = 'smem constant byte address 0x4 - core index']
  #allocation1 [shape = 'u32[144,128]{1,0:T(1,128)}', space=vmem, size = 0x12000, scoped, tag = 'internal scratch']
  #allocation2 [shape = 'f32[4,16]{1,0:T(4,128)}', space=vmem, size = 0x800, scoped, tag = 'scratch operand']
  %s0 = inlined_call_operand.hbm [shape: f32[2,4,16,16], index: 0, kind: input, shape index: {}]
  %s1 = inlined_call_operand.hbm [shape: f32[2,8,128], index: 1, kind: output, shape index: {}]
  %s2 = sld [smem:[#allocation0]]
  $region45: #{tpu_custom_call.1} parent=0
    _
  %s4 = ssub.s32 1, %s2
  %s5 = scalar_select 0, %s4, %s2
  $region1: #{tpu_custom_call.1} parent=0
    #allocation3 [shape = 'u8[65536]{0}', space=vmem, size = 0x10000, scoped, tag = 'input window, operand 0']
    #allocation4 [shape = 's32[2]{0}', space=sflag, size = 0x8, scoped, tag = 'scoped memory for tpu_custom_call.1']
    #allocation5 [shape = 's32[2]{0}', space=sflag, size = 0x8, scoped, tag = 'scoped memory for tpu_custom_call.1']
    #allocation6 [shape = 'u8[8192]{0}', space=vmem, size = 0x2000, scoped, tag = 'output window, operand 0']
    %6 = vsyncpa [#allocation4], 0
    %s7 = scalar_lea.sflag [#allocation4], 1
    %8 = vsyncpa %s7, 0
    %9 = vsyncpa [#allocation5], 0
    %s10 = scalar_lea.sflag [#allocation5], 1
    %11 = vsyncpa %s10, 0
    loop: start=0, step=1, limit=4
    $region2: #{tpu_custom_call.1} parent=1 // loop_pre_header
      _
    $region3: #{tpu_custom_call.1} parent=1 // loop_header
      %s13 = sphi 0, %s17
      %p14 = scmp.ge.s32.totalorder %s13, 4
      %s20 = sphi 0, %s39
      %s21 = sphi 0, %s35
      %s22 = sphi 0, %s31
      %s23 = sphi 0, %s20
      %s24 = sphi 0, %s21
      %s25 = sphi 0, %s22
      %s26 = sphi 0, %s23
      %s27 = sphi 0, %s24
      %s28 = sphi 0, %s25
      %s46 = sphi 0, %s48
      %s49 = sphi 0, %s46
      %s50 = sphi 0, %s49
      %s66 = sphi 0, %s50
      %s72 = sphi 0, %s74
      %s75 = sphi 0, %s72
      %s76 = sphi 0, %s75
      %s92 = sphi 0, %s76
    $region4: #{tpu_custom_call.1} parent=1 // loop_header_branch
      %16 = sbr.rel (%p14) target = $region8
    $region5: #{tpu_custom_call.1} parent=1 // loop_body
      %s18 = ssub.s32 %s13, 1
      %s19 = ssub.s32 %s13, 2
      %s29 = sadd.s32 1, %s22
      %p30 = scmp.ge.s32.totalorder %s29, 1
      %s31 = scalar_select %p30, 0, %s29
      %s32 = sadd.s32 1, %s21
      %s33 = scalar_select %p30, %s32, %s21
      %p34 = scmp.ge.s32.totalorder %s33, 1
      %s35 = scalar_select %p34, 0, %s33
      %s36 = sadd.s32 1, %s20
      %s37 = scalar_select %p34, %s36, %s20
      %p38 = scmp.ge.s32.totalorder %s37, 2
      %s39 = scalar_select %p38, 0, %s37
      %s40 = ssub.s32 %s20, %s39
      %s41 = ssub.s32 %s21, %s35
      %s42 = sor.u32 %s40, %s41
      %s43 = ssub.s32 %s22, %s31
      %s44 = sor.u32 %s42, %s43
      %p45 = scmp.eq.s32.totalorder %s44, 0
      %s47 = sadd.s32 %s46, 1
      %s48 = scalar_select %p45, %s46, %s47
      %p51 = pneg %p45
      %p52 = scmp.eq.s32.totalorder %s13, 1
      %p53 = por %p51, %p52
      %p54 = scmp.ne.s32.totalorder %s46, %s49
      %p55 = scmp.eq.s32.totalorder %s13, 0
      %p56 = por %p54, %p55
      %p57 = scmp.ne.s32.totalorder %s46, %s49
      %p58 = scmp.eq.s32.totalorder %s18, 1
      %p59 = por %p57, %p58
      %p60 = scmp.ne.s32.totalorder %s49, %s50
      %p61 = scmp.eq.s32.totalorder %s18, 0
      %p62 = por %p60, %p61
      %p63 = scmp.ne.s32.totalorder %s49, %s50
      %p64 = scmp.eq.s32.totalorder %s19, 1
      %p65 = por %p63, %p64
      %p67 = scmp.ne.s32.totalorder %s50, %s66
      %p68 = scmp.eq.s32.totalorder %s19, 0
      %p69 = por %p67, %p68
      %s70 = ssub.s32 %s20, %s39
      %p71 = scmp.eq.s32.totalorder %s70, 0
      %s73 = sadd.s32 %s72, 1
      %s74 = scalar_select %p71, %s72, %s73
      %p77 = pneg %p71
      %p78 = scmp.eq.s32.totalorder %s13, 1
      %p79 = por %p77, %p78
      %p80 = scmp.ne.s32.totalorder %s72, %s75
      %p81 = scmp.eq.s32.totalorder %s13, 0
      %p82 = por %p80, %p81
      %p83 = scmp.ne.s32.totalorder %s72, %s75
      %p84 = scmp.eq.s32.totalorder %s18, 1
      %p85 = por %p83, %p84
      %p86 = scmp.ne.s32.totalorder %s75, %s76
      %p87 = scmp.eq.s32.totalorder %s18, 0
      %p88 = por %p86, %p87
      %p89 = scmp.ne.s32.totalorder %s75, %s76
      %p90 = scmp.eq.s32.totalorder %s19, 1
      %p91 = por %p89, %p90
      %p93 = scmp.ne.s32.totalorder %s76, %s92
      %p94 = scmp.eq.s32.totalorder %s19, 0
      %p95 = por %p93, %p94
      %p96 = scmp.le.s32.totalorder 1, %s13
      %p97 = scmp.lt.s32.totalorder %s13, 3
      %p98 = pnand %p96, %p97
      %p99 = pneg %p98
      // Predicated region
      $region9: #{tpu_custom_call.1} parent=5 // pred_check
        _
      $region10: #{tpu_custom_call.1} parent=5 // pred_check_branch
        %101 = sbr.rel (%p98) target = $region12
      $region11: #{tpu_custom_call.1} parent=5 // pred_region
        %s102 = ssub.s32 %s13, 1
      $region12: #{tpu_custom_call.1} parent=5 // pred_fallthru
        _
      %p103 = scmp.lt.s32.totalorder %s13, 2
      // Predicated region
      $region13: #{tpu_custom_call.1} parent=5 // pred_check
        %p104 = pneg %p103
      $region14: #{tpu_custom_call.1} parent=5 // pred_check_branch
        %106 = sbr.rel (%p104) target = $region16
      $region15: #{tpu_custom_call.1} parent=5 // pred_region
        // Predicated region
        $region17: #{tpu_custom_call.1} parent=15 // pred_check
          %p107 = pneg %p56
        $region18: #{tpu_custom_call.1} parent=15 // pred_check_branch
          %109 = sbr.rel (%p107) target = $region20
        $region19: #{tpu_custom_call.1} parent=15 // pred_region
          %s110 = sand.u32 %s46, 1
          %s111 = scalar_lea.sflag [#allocation4], %s110
          %s112 = sand.u32 %s46, 1
          %s113 = smul.addr %s112, 64
          %s114 = scalar_lea.vmem [#allocation3], %s113
          %s115 = smul.u32 4, %s21
          %s116 = smul.u32 2, %s22
          %s118 = ssub.s32 1024, 1024
          %119 = vsyncadd %s111, %s118
          %s120 = smul.addr %s115, 2
          %s121 = sadd.s32 %s116, %s120
          %s122 = smul.addr %s20, 8
          %s123 = sadd.s32 %s121, %s122
          %s124 = smul.addr %s123, 128
          %s125 = scalar_lea.hbm %s0, %s124
          %s126 = sshll.u32 %s114, 4
          %s127 = int_to_ptr.vmem [resolvable:$true] %s126
          %132 = dma.hbm_to_vmem [thread:$0]  %s125, 1024, %s127, %s111, 128, 128, 8
        $region20: #{tpu_custom_call.1} parent=15 // pred_fallthru
          _
      $region16: #{tpu_custom_call.1} parent=5 // pred_fallthru
        _
      %p133 = scmp.le.s32.totalorder 1, %s13
      %p134 = scmp.lt.s32.totalorder %s13, 3
      %p135 = pnand %p133, %p134
      %p136 = pneg %p135
      // Predicated region
      $region21: #{tpu_custom_call.1} parent=5 // pred_check
        _
      $region22: #{tpu_custom_call.1} parent=5 // pred_check_branch
        %138 = sbr.rel (%p135) target = $region24
      $region23: #{tpu_custom_call.1} parent=5 // pred_region
        %s139 = ssub.s32 %s13, 1
        %s140 = sand.u32 %s49, 1
        %s141 = scalar_lea.sflag [#allocation4], %s140
        %s142 = sand.u32 %s49, 1
        %s143 = smul.addr %s142, 64
        %s144 = scalar_lea.vmem [#allocation3], %s143
        // Predicated region
        $region25: #{tpu_custom_call.1} parent=23 // pred_check
          %p145 = pneg %p62
        $region26: #{tpu_custom_call.1} parent=23 // pred_check_branch
          %147 = sbr.rel (%p145) target = $region28
        $region27: #{tpu_custom_call.1} parent=23 // pred_region
          %148 = dma.done %s141, 1024
        $region28: #{tpu_custom_call.1} parent=23 // pred_fallthru
          _
        %s149 = sand.u32 %s49, 1
        %s150 = scalar_lea.sflag [#allocation4], %s149
        %s151 = sand.u32 %s49, 1
        %s152 = smul.addr %s151, 64
        %s153 = scalar_lea.vmem [#allocation3], %s152
        %p154 = pneg %p62
        %p155 = pneg %p59
        %p156 = pneg %p88
        %p157 = pneg %p85
        %s158 = sand.u32 %s75, 1
        %s159 = scalar_lea.sflag [#allocation5], %s158
        %s160 = sand.u32 %s75, 1
        %s161 = smul.addr %s160, 8
        %s162 = scalar_lea.vmem [#allocation6], %s161
        %s163 = smul.u32 4, %s24
        %s164 = smul.u32 2, %s25
        %p165 = scmp.eq.s32.totalorder %s24, 0
        %p166 = scmp.eq.s32.totalorder %s25, 0
        %p167 = pnand %p165, %p166
        %p168 = pneg %p167
        // Predicated region
        $region29: #{tpu_custom_call.1} parent=23 // pred_check
          _
        $region30: #{tpu_custom_call.1} parent=23 // pred_check_branch
          %170 = sbr.rel (%p167) target = $region32
        $region31: #{tpu_custom_call.1} parent=23 // pred_region
          %171 = vst [vmem:[%s162] sm:$0xff] 0.0
        $region32: #{tpu_custom_call.1} parent=23 // pred_fallthru
          _
        %v172 = vld [vmem:[%s144] sm:$0xff]
        %v173 = vld [vmem:[%s144 + $0x8] sm:$0xff]
        %v174 = vld [vmem:[%s144 + $0x10] sm:$0xff]
        %v175 = vld [vmem:[%s144 + $0x18] sm:$0xff]
        %v176 = vld [vmem:[%s144 + $0x20] sm:$0xff]
        %v177 = vld [vmem:[%s144 + $0x28] sm:$0xff]
        %v178 = vld [vmem:[%s144 + $0x30] sm:$0xff]
        %v179 = vld [vmem:[%s144 + $0x38] sm:$0xff]
        %188 = vrot.lane.b32.xlu0 %v172, 1
        %v189 = vpop.permute.xlu0 %188
        %190 = vrot.lane.b32.xlu0 %v173, 1
        %v191 = vpop.permute.xlu0 %190
        %192 = vrot.lane.b32.xlu0 %v174, 1
        %v193 = vpop.permute.xlu0 %192
        %194 = vrot.lane.b32.xlu0 %v175, 1
        %v195 = vpop.permute.xlu0 %194
        %196 = vrot.lane.b32.xlu0 %v176, 1
        %v197 = vpop.permute.xlu0 %196
        %198 = vrot.lane.b32.xlu0 %v177, 1
        %v199 = vpop.permute.xlu0 %198
        %200 = vrot.lane.b32.xlu0 %v178, 1
        %v201 = vpop.permute.xlu0 %200
        %202 = vrot.lane.b32.xlu0 %v179, 1
        %v203 = vpop.permute.xlu0 %202
        %v212 = vsub.f32 %v172, %v189
        %v213 = vsub.f32 %v173, %v191
        %v214 = vsub.f32 %v174, %v193
        %v215 = vsub.f32 %v175, %v195
        %v216 = vsub.f32 %v176, %v197
        %v217 = vsub.f32 %v177, %v199
        %v218 = vsub.f32 %v178, %v201
        %v219 = vsub.f32 %v179, %v203
        %v220 = vmul.f32 %v212, %v212
        %v221 = vmul.f32 %v213, %v213
        %v222 = vmul.f32 %v214, %v214
        %v223 = vmul.f32 %v215, %v215
        %v224 = vmul.f32 %v216, %v216
        %v225 = vmul.f32 %v217, %v217
        %v226 = vmul.f32 %v218, %v218
        %v227 = vmul.f32 %v219, %v219
        %236 = vrot.lane.b32.xlu0 %v220, 127
        %v237 = vpop.permute.xlu0 %236
        %238 = vrot.lane.b32.xlu0 %v221, 127
        %v239 = vpop.permute.xlu0 %238
        %240 = vrot.lane.b32.xlu0 %v222, 127
        %v241 = vpop.permute.xlu0 %240
        %242 = vrot.lane.b32.xlu0 %v223, 127
        %v243 = vpop.permute.xlu0 %242
        %244 = vrot.lane.b32.xlu0 %v224, 127
        %v245 = vpop.permute.xlu0 %244
        %246 = vrot.lane.b32.xlu0 %v225, 127
        %v247 = vpop.permute.xlu0 %246
        %248 = vrot.lane.b32.xlu0 %v226, 127
        %v249 = vpop.permute.xlu0 %248
        %250 = vrot.lane.b32.xlu0 %v227, 127
        %v251 = vpop.permute.xlu0 %250
        %vm260 = vcmask 121856
        %v261 = vsel %vm260, %v237, 0.0
        %v262 = vsel %vm260, %v239, 0.0
        %v263 = vadd.f32 %v261, %v262
        %v264 = vsel %vm260, %v241, 0.0
        %v265 = vadd.f32 %v263, %v264
        %v266 = vsel %vm260, %v243, 0.0
        %v267 = vadd.f32 %v265, %v266
        %v268 = vsel %vm260, %v245, 0.0
        %v269 = vadd.f32 %v267, %v268
        %v270 = vsel %vm260, %v247, 0.0
        %v271 = vadd.f32 %v269, %v270
        %v272 = vsel %vm260, %v249, 0.0
        %v273 = vadd.f32 %v271, %v272
        %v274 = vsel %vm260, %v251, 0.0
        %v275 = vadd.f32 %v273, %v274
        %276 = vadd.xlane.f32.xlu0 %v275
        %v277 = vpop.xlane.xlu0 %276
        %v278 = vrot.slane %v277, 4
        %v279 = vadd.f32 %v277, %v278
        %v280 = vrot.slane %v279, 2
        %v281 = vadd.f32 %v279, %v280
        %v282 = vrot.slane %v281, 1
        %v283 = vadd.f32 %v281, %v282
        %s284 = vtos %v283
        %v285 = vld [vmem:[%s144 + $0x1] sm:$0xff]
        %v286 = vld [vmem:[%s144 + $0x9] sm:$0x7f]
        %v287 = vld [vmem:[%s144 + $0x11] sm:$0xff]
        %v288 = vld [vmem:[%s144 + $0x19] sm:$0x7f]
        %v289 = vld [vmem:[%s144 + $0x21] sm:$0xff]
        %v290 = vld [vmem:[%s144 + $0x29] sm:$0x7f]
        %v291 = vld [vmem:[%s144 + $0x31] sm:$0xff]
        %v292 = vld [vmem:[%s144 + $0x39] sm:$0x7f]
        %v293 = vld [vmem:[%s144 + $0x8] sm:$0x7f]
        %v294 = vld [vmem:[%s144 + $0x18] sm:$0x7f]
        %v295 = vld [vmem:[%s144 + $0x28] sm:$0x7f]
        %v296 = vld [vmem:[%s144 + $0x38] sm:$0x7f]
        %v297 = vsub.f32 %v285, %v172
        %v298 = vsub.f32 %v286, %v293
        %v299 = vsub.f32 %v287, %v174
        %v300 = vsub.f32 %v288, %v294
        %v301 = vsub.f32 %v289, %v176
        %v302 = vsub.f32 %v290, %v295
        %v303 = vsub.f32 %v291, %v178
        %v304 = vsub.f32 %v292, %v296
        %v305 = vmul.f32 %v297, %v297
        %v306 = vmul.f32 %v298, %v298
        %v307 = vmul.f32 %v299, %v299
        %v308 = vmul.f32 %v300, %v300
        %v309 = vmul.f32 %v301, %v301
        %v310 = vmul.f32 %v302, %v302
        %v311 = vmul.f32 %v303, %v303
        %v312 = vmul.f32 %v304, %v304
        %vm313 = vcmask 130048
        %v314 = vsel %vm313, %v305, 0.0
        %vm315 = vcmask 129024
        %v316 = vsel %vm315, %v306, 0.0
        %v317 = vadd.f32 %v314, %v316
        %v318 = vsel %vm313, %v307, 0.0
        %v319 = vadd.f32 %v317, %v318
        %v320 = vsel %vm315, %v308, 0.0
        %v321 = vadd.f32 %v319, %v320
        %v322 = vsel %vm313, %v309, 0.0
        %v323 = vadd.f32 %v321, %v322
        %v324 = vsel %vm315, %v310, 0.0
        %v325 = vadd.f32 %v323, %v324
        %v326 = vsel %vm313, %v311, 0.0
        %v327 = vadd.f32 %v325, %v326
        %v328 = vsel %vm315, %v312, 0.0
        %v329 = vadd.f32 %v327, %v328
        %330 = vadd.xlane.f32.xlu0 %v329
        %v331 = vpop.xlane.xlu0 %330
        %v332 = vrot.slane %v331, 4
        %v333 = vadd.f32 %v331, %v332
        %v334 = vrot.slane %v333, 2
        %v335 = vadd.f32 %v333, %v334
        %v336 = vrot.slane %v335, 1
        %v337 = vadd.f32 %v335, %v336
        %s338 = vtos %v337
        %v339 = vlaneseq
        %v340 = vshrl.u32 %v339, 7
        %v341 = vlaneseq
        %v342 = vand.u32 %v341, 127
        %vm343 = vcmp.eq.s32.totalorder %v340, 0
        %vm344 = vcmp.eq.s32.totalorder %v342, 0
        %vm345 = vmand %vm343, %vm344
        %v346 = vstv %s338
        %v347 = vsel %vm345, %v346, 0.0
        %vm348 = vcmp.eq.s32.totalorder %v340, 1
        %vm349 = vmand %vm348, %vm344
        %v350 = vstv %s284
        %v351 = vsel %vm349, %v350, 0.0
        %v352 = vadd.f32 %v347, %v351
        %v353 = vld [vmem:[%s162] sm:$0xff]
        %v354 = vadd.f32 %v353, %v352
        %355 = vst [vmem:[%s162] sm:$0xff] %v354
        %s356 = sand.u32 %s75, 1
        %s357 = scalar_lea.sflag [#allocation5], %s356
        %s358 = sand.u32 %s75, 1
        %s359 = smul.addr %s358, 8
        %s360 = scalar_lea.vmem [#allocation6], %s359
        // Predicated region
        $region33: #{tpu_custom_call.1} parent=23 // pred_check
          %p361 = pneg %p85
        $region34: #{tpu_custom_call.1} parent=23 // pred_check_branch
          %363 = sbr.rel (%p361) target = $region36
        $region35: #{tpu_custom_call.1} parent=23 // pred_region
          %s365 = ssub.s32 128, 128
          %366 = vsyncadd %s357, %s365
          %s367 = smul.addr %s23, 128
          %s368 = scalar_lea.hbm %s1, %s367
          %s370 = sshll.u32 %s360, 4
          %s371 = int_to_ptr.vmem [resolvable:$true] %s370
          %373 = dma.vmem_to_hbm [thread:$0]  %s371, 128, %s368, %s357
        $region36: #{tpu_custom_call.1} parent=23 // pred_fallthru
          _
      $region24: #{tpu_custom_call.1} parent=5 // pred_fallthru
        _
      %p374 = scmp.le.s32.totalorder 2, %s13
      // Predicated region
      $region37: #{tpu_custom_call.1} parent=5 // pred_check
        %p375 = pneg %p374
      $region38: #{tpu_custom_call.1} parent=5 // pred_check_branch
        %377 = sbr.rel (%p375) target = $region40
      $region39: #{tpu_custom_call.1} parent=5 // pred_region
        %s378 = ssub.s32 %s13, 2
        // Predicated region
        $region41: #{tpu_custom_call.1} parent=39 // pred_check
          %p379 = pneg %p91
        $region42: #{tpu_custom_call.1} parent=39 // pred_check_branch
          %381 = sbr.rel (%p379) target = $region44
        $region43: #{tpu_custom_call.1} parent=39 // pred_region
          %s382 = sand.u32 %s76, 1
          %s383 = scalar_lea.sflag [#allocation5], %s382
          %s384 = sand.u32 %s76, 1
          %s385 = smul.addr %s384, 8
          %s386 = scalar_lea.vmem [#allocation6], %s385
          %387 = dma.done %s383, 128
        $region44: #{tpu_custom_call.1} parent=39 // pred_fallthru
          _
      $region40: #{tpu_custom_call.1} parent=5 // pred_fallthru
        _
    $region6: #{tpu_custom_call.1} parent=1 // loop_footer
      %s17 = sadd.s32 1, %s13
    $region7: #{tpu_custom_call.1} parent=1 // loop_footer_branch
      %12 = sbr.rel target = $region3
    $region8: #{tpu_custom_call.1} parent=1 // loop_exit
      _
    %388 = vsyncpa [#allocation4], 1
    %s389 = scalar_lea.sflag [#allocation4], 1
    %390 = vsyncpa %s389, 1
    %391 = vsyncpa [#allocation5], 1
    %s392 = scalar_lea.sflag [#allocation5], 1
    %393 = vsyncpa %s392, 1

</llo_original>
